<compile_context>
chip_gen: v7x
topology: tpu7x:2x2x1
jax: 0.10.0
libtpu: 0.0.40
codegen_flags: <defaults>
</compile_context>

<pallas_src>
import jax
import jax.numpy as jnp
from jax import lax
from jax.experimental import pallas as pl
from jax.experimental.pallas import tpu as pltpu


def _gcn_kernel(x_ref, w_ref, adj_ref, out_ref, support_ref):
    # support[:, j-tile] = X @ W[:, j-tile]; computed once per Fout tile (the
    # inner row axis restarts at 0 for every Fout tile, also per core).
    @pl.when(pl.program_id(1) == 0)
    def _():
        support_ref[...] = jnp.dot(
            x_ref[...], w_ref[...],
            preferred_element_type=jnp.float32).astype(support_ref.dtype)

    # out[i-tile, j-tile] = adj[i-tile, :] @ support[:, j-tile]
    out_ref[...] = jnp.dot(
        adj_ref[...], support_ref[...],
        preferred_element_type=jnp.float32).astype(out_ref.dtype)


def _gcn_kernel_bias(x_ref, w_ref, adj_ref, b_ref, out_ref, support_ref):
    @pl.when(pl.program_id(1) == 0)
    def _():
        support_ref[...] = jnp.dot(
            x_ref[...], w_ref[...],
            preferred_element_type=jnp.float32).astype(support_ref.dtype)

    acc = jnp.dot(adj_ref[...], support_ref[...],
                  preferred_element_type=jnp.float32)
    out_ref[...] = (acc + b_ref[...].astype(jnp.float32)).astype(out_ref.dtype)


def graph_convolution(x, weight, adj, bias=None, *,
                      row_block=256, col_block=256,
                      compute_dtype=jnp.bfloat16):
    """output = adj @ (x @ weight) [+ bias]   — matches GraphConvolution.forward."""
    N, Fin = x.shape
    Fin2, Fout = weight.shape
    assert Fin == Fin2, "weight shape mismatch"
    assert adj.shape == (N, N), "adj must be (N, N)"

    tm = min(row_block, N)                  # adj/out rows per grid step
    tn = min(col_block, Fout)               # output-feature columns per tile
    assert tn == Fout or tn % 128 == 0, "col_block must be lane-aligned"

    out_dtype = x.dtype
    adj_c = adj.astype(compute_dtype)       # stream adj in the (bf16) compute dtype

    # grid = (Fout-tile axis [parallel, v7x megacore], adj-row axis [arbitrary]).
    grid = (pl.cdiv(Fout, tn), pl.cdiv(N, tm))

    in_specs = [
        # X: fully VMEM-resident; constant block index -> single buffer.
        pl.BlockSpec((N, Fin), lambda j, i: (0, 0),
                     pipeline_mode=pl.Buffered(buffer_count=1)),
        # W: one Fout tile; only changes with the outer (Fout) axis.
        pl.BlockSpec((Fin, tn), lambda j, i: (0, j),
                     pipeline_mode=pl.Buffered(buffer_count=1)),
        # adj: stream lane-dense row blocks.
        pl.BlockSpec((tm, N), lambda j, i: (i, 0)),
    ]
    args = [x, weight, adj_c]
    kernel = _gcn_kernel
    if bias is not None:
        in_specs.append(pl.BlockSpec((1, tn), lambda j, i: (0, j)))
        args.append(bias.reshape(1, Fout))
        kernel = _gcn_kernel_bias

    # VMEM budget -> vmem_limit_bytes: single-buffered X + W tile, double-buffered
    # adj/out blocks, bf16 support scratch, plus headroom.
    csize = jnp.dtype(compute_dtype).itemsize
    osize = jnp.dtype(out_dtype).itemsize
    vmem_needed = (
        N * Fin * x.dtype.itemsize
        + Fin * tn * weight.dtype.itemsize
        + 2 * tm * N * csize
        + 2 * tm * tn * osize
        + N * tn * csize
        + (2 * tn * bias.dtype.itemsize if bias is not None else 0)
    )
    vmem_limit = min(max((vmem_needed * 5) // 4 + (2 << 20), 32 << 20), 128 << 20)

    cost = pl.CostEstimate(
        flops=2 * N * Fin * Fout + 2 * N * N * Fout,
        transcendentals=0,
        bytes_accessed=(N * Fin * x.dtype.itemsize
                        + Fin * Fout * weight.dtype.itemsize
                        + N * N * csize
                        + N * Fout * osize),
    )

    return pl.pallas_call(
        kernel,
        out_shape=jax.ShapeDtypeStruct((N, Fout), out_dtype),
        grid=grid,
        in_specs=in_specs,
        out_specs=pl.BlockSpec((tm, tn), lambda j, i: (i, j)),
        scratch_shapes=[pltpu.VMEM((N, tn), compute_dtype)],
        compiler_params=pltpu.CompilerParams(
            # Fout tiles are independent (usable by both v7x TCs); the row axis
            # reuses the per-tile support scratch, so it stays sequential per core.
            dimension_semantics=("parallel", "arbitrary"),
            vmem_limit_bytes=int(vmem_limit),
        ),
        cost_estimate=cost,
    )(*args)


if __name__ == "__main__":
    # Small but lane-dense shapes: N nodes, 128 -> 128 features.
    N, Fin, Fout = 256, 128, 128

    key = jax.random.PRNGKey(0)
    kx, kw, ka, kb = jax.random.split(key, 4)

    x = jax.random.normal(kx, (N, Fin), dtype=jnp.float32)

    # Mirror reset_parameters(): uniform(-stdv, stdv), stdv = 1/sqrt(out_features).
    stdv = 1.0 / (Fout ** 0.5)
    weight = jax.random.uniform(kw, (Fin, Fout), jnp.float32, -stdv, stdv)

    # Row-normalized random adjacency (typical GCN usage).
    adj_raw = jax.random.uniform(ka, (N, N), jnp.float32)
    adj = adj_raw / jnp.sum(adj_raw, axis=-1, keepdims=True)

    ref = jnp.matmul(adj, jnp.matmul(x, weight, precision=lax.Precision.HIGHEST),
                     precision=lax.Precision.HIGHEST)

    # --- default module config (bias=False), default bf16 compute path ---
    out = graph_convolution(x, weight, adj)
    jax.block_until_ready(out)
    assert out.shape == (N, Fout)
    assert jnp.allclose(out, ref, rtol=2e-2, atol=2e-2), "no-bias (bf16) mismatch"

    # --- full-precision path ---
    out_f32 = graph_convolution(x, weight, adj, compute_dtype=jnp.float32)
    jax.block_until_ready(out_f32)
    assert jnp.allclose(out_f32, ref, rtol=5e-3, atol=5e-3), "no-bias (f32) mismatch"

    # --- bias=True path ---
    bias = jax.random.uniform(kb, (Fout,), jnp.float32, -stdv, stdv)
    out_b = graph_convolution(x, weight, adj, bias=bias)
    jax.block_until_ready(out_b)
    assert jnp.allclose(out_b, ref + bias, rtol=2e-2, atol=2e-2), "bias mismatch"

    print("KERNEL_OK")
</pallas_src>

<mosaic_0001>
module attributes {stable_mosaic.version = 11 : i64} {
  func.func @_gcn_kernel(%arg0: i32, %arg1: i32, %arg2: memref<256x128xf32, #tpu.memory_space<vmem>>, %arg3: memref<128x128xf32, #tpu.memory_space<vmem>>, %arg4: memref<256x256xbf16, #tpu.memory_space<vmem>>, %arg5: memref<256x128xf32, #tpu.memory_space<vmem>>, %arg6: memref<256x128xbf16, #tpu.memory_space<vmem>>) attributes {dimension_semantics = [#tpu.dimension_semantics<parallel>, #tpu.dimension_semantics<arbitrary>], iteration_bounds = array<i64: 1, 1>, scalar_prefetch = 0 : i64, scratch_operands = 1 : i64, tpu.core_type = #tpu.core_type<tc>, window_params = [{pipeline_mode = #tpu.pipeline_mode<synchronous>, transform_indices = @transform_0, window_bounds = array<i64: 256, 128>}, {pipeline_mode = #tpu.pipeline_mode<synchronous>, transform_indices = @transform_1, window_bounds = array<i64: 128, 128>}, {transform_indices = @transform_2, window_bounds = array<i64: 256, 256>}, {transform_indices = @transform_3, window_bounds = array<i64: 256, 128>}]} {
    %c0_i32 = arith.constant 0 : i32
    %0 = arith.cmpi eq, %arg1, %c0_i32 : i32
    %1 = arith.extui %0 : i1 to i32
    %c0_i32_0 = arith.constant 0 : i32
    %2 = arith.cmpi ne, %1, %c0_i32_0 : i32
    scf.if %2 {
      %c0_6 = arith.constant 0 : index
      %c0_7 = arith.constant 0 : index
      %7 = vector.load %arg2[%c0_6, %c0_7] : memref<256x128xf32, #tpu.memory_space<vmem>>, vector<256x128xf32>
      %c0_8 = arith.constant 0 : index
      %c0_9 = arith.constant 0 : index
      %8 = vector.load %arg3[%c0_8, %c0_9] : memref<128x128xf32, #tpu.memory_space<vmem>>, vector<128x128xf32>
      %cst_10 = arith.constant dense<0.000000e+00> : vector<256x128xf32>
      %9 = tpu.matmul %7, %8, %cst_10 {dimension_numbers = #tpu.dot_dimension_numbers<[1], [0], [0], [1], [0, 0, 1, 1], [], []>} : vector<256x128xf32>, vector<128x128xf32>, vector<256x128xf32> -> vector<256x128xf32>
      %10 = arith.truncf %9 : vector<256x128xf32> to vector<256x128xbf16>
      %c0_11 = arith.constant 0 : index
      %c0_12 = arith.constant 0 : index
      %11 = vector.load %arg6[%c0_11, %c0_12] : memref<256x128xbf16, #tpu.memory_space<vmem>>, vector<256x128xbf16>
      tpu.vector_store %arg6[%c0_11, %c0_12], %10 {strides = array<i32>} : memref<256x128xbf16, #tpu.memory_space<vmem>>, vector<256x128xbf16>,
    } else {
    }
    %c0 = arith.constant 0 : index
    %c0_1 = arith.constant 0 : index
    %3 = vector.load %arg4[%c0, %c0_1] : memref<256x256xbf16, #tpu.memory_space<vmem>>, vector<256x256xbf16>
    %c0_2 = arith.constant 0 : index
    %c0_3 = arith.constant 0 : index
    %4 = vector.load %arg6[%c0_2, %c0_3] : memref<256x128xbf16, #tpu.memory_space<vmem>>, vector<256x128xbf16>
    %cst = arith.constant dense<0.000000e+00> : vector<256x128xf32>
    %5 = tpu.matmul %3, %4, %cst {dimension_numbers = #tpu.dot_dimension_numbers<[1], [0], [0], [1], [0, 0, 1, 1], [], []>} : vector<256x256xbf16>, vector<256x128xbf16>, vector<256x128xf32> -> vector<256x128xf32>
    %c0_4 = arith.constant 0 : index
    %c0_5 = arith.constant 0 : index
    %6 = vector.load %arg5[%c0_4, %c0_5] : memref<256x128xf32, #tpu.memory_space<vmem>>, vector<256x128xf32>
    tpu.vector_store %arg5[%c0_4, %c0_5], %5 {strides = array<i32>} : memref<256x128xf32, #tpu.memory_space<vmem>>, vector<256x128xf32>,
    return
  }
  func.func @transform_0(%arg0: i32, %arg1: i32) -> (i32, i32) {
    %c0_i32 = arith.constant 0 : i32
    %c0_i32_0 = arith.constant 0 : i32
    %c0_i32_1 = arith.constant 0 : i32
    return %c0_i32, %c0_i32_0 : i32, i32
  }
  func.func @transform_1(%arg0: i32, %arg1: i32) -> (i32, i32) {
    %c0_i32 = arith.constant 0 : i32
    %c0_i32_0 = arith.constant 0 : i32
    return %c0_i32, %arg0 : i32, i32
  }
  func.func @transform_2(%arg0: i32, %arg1: i32) -> (i32, i32) {
    %c0_i32 = arith.constant 0 : i32
    %c0_i32_0 = arith.constant 0 : i32
    return %arg1, %c0_i32 : i32, i32
  }
  func.func @transform_3(%arg0: i32, %arg1: i32) -> (i32, i32) {
    %c0_i32 = arith.constant 0 : i32
    return %arg1, %arg0 : i32, i32
  }
}

</mosaic_0001>

<llo_original>
// kernel: tpu_custom_call.1
$region0: #{tpu_custom_call.1}
  #allocation0 [shape = 'u32[]', space=smem, size = 0x4, offset = 0x4, fixed_abs, tag = 'smem constant byte address 0x4 - core index']
  #allocation1 [shape = 'u32[144,128]{1,0:T(1,128)}', space=vmem, size = 0x12000, scoped, tag = 'internal scratch']
  #allocation2 [shape = 'bf16[256,128]{1,0:T(16,128)(2,1)}', space=vmem, size = 0x10000, scoped, tag = 'scratch operand']
  %s0 = inlined_call_operand.hbm [shape: f32[256,128], index: 0, kind: input, shape index: {}]
  %s1 = inlined_call_operand.hbm [shape: f32[128,128], index: 1, kind: input, shape index: {}]
  %s2 = inlined_call_operand.hbm [shape: bf16[256,256], index: 2, kind: input, shape index: {}]
  %s3 = inlined_call_operand.hbm [shape: f32[256,128], index: 3, kind: output, shape index: {}]
  %s4 = sld [smem:[#allocation0]]
  $region38: #{tpu_custom_call.1} parent=0
    _
  %s6 = ssub.s32 1, %s4
  %s7 = scalar_select 0, %s6, %s4
  $region1: #{tpu_custom_call.1} parent=0
    #allocation3 [shape = 'u8[131072]{0}', space=vmem, size = 0x20000, scoped, tag = 'input window, operand 0, single buffered']
    #allocation4 [shape = 's32[1]{0}', space=sflag, size = 0x4, scoped, tag = 'scoped memory for tpu_custom_call.1']
    #allocation5 [shape = 's32[1]{0}', space=sflag, size = 0x4, scoped, tag = 'scoped memory for tpu_custom_call.1']
    #allocation6 [shape = 'u8[65536]{0}', space=vmem, size = 0x10000, scoped, tag = 'input window, operand 1, single buffered']
    #allocation7 [shape = 's32[1]{0}', space=sflag, size = 0x4, scoped, tag = 'scoped memory for tpu_custom_call.1']
    #allocation8 [shape = 'u8[131072]{0}', space=vmem, size = 0x20000, scoped, tag = 'input window, operand 2, single buffered']
    #allocation9 [shape = 'u8[131072]{0}', space=vmem, size = 0x20000, scoped, tag = 'output window, operand 0, single buffered']
    %8 = vsyncpa [#allocation4], 0
    %9 = vsyncpa [#allocation7], 0
    %10 = vsyncpa [#allocation5], 0
    // Predicated region
    $region2: #{tpu_custom_call.1} parent=1 // pred_check
      _
    $region3: #{tpu_custom_call.1} parent=1 // pred_check_branch
      %12 = sbr.rel (0) target = $region5
    $region4: #{tpu_custom_call.1} parent=1 // pred_region
      %s14 = ssub.s32 4096, 4096
      %15 = vsyncadd [#allocation4], %s14
      %s16 = sshll.u32 [#allocation3], 4
      %s17 = int_to_ptr.vmem [resolvable:$true] %s16
      %22 = dma.hbm_to_vmem [thread:$0]  %s0, 4096, %s17, [#allocation4], 128, 128, 8
    $region5: #{tpu_custom_call.1} parent=1 // pred_fallthru
      _
    // Predicated region
    $region6: #{tpu_custom_call.1} parent=1 // pred_check
      _
    $region7: #{tpu_custom_call.1} parent=1 // pred_check_branch
      %24 = sbr.rel (0) target = $region9
    $region8: #{tpu_custom_call.1} parent=1 // pred_region
      %s26 = ssub.s32 2048, 2048
      %27 = vsyncadd [#allocation7], %s26
      %s28 = sshll.u32 [#allocation6], 4
      %s29 = int_to_ptr.vmem [resolvable:$true] %s28
      %34 = dma.hbm_to_vmem [thread:$0]  %s1, 2048, %s29, [#allocation7], 128, 128, 8
    $region9: #{tpu_custom_call.1} parent=1 // pred_fallthru
      _
    // Predicated region
    $region10: #{tpu_custom_call.1} parent=1 // pred_check
      _
    $region11: #{tpu_custom_call.1} parent=1 // pred_check_branch
      %36 = sbr.rel (0) target = $region13
    $region12: #{tpu_custom_call.1} parent=1 // pred_region
      %s38 = ssub.s32 4096, 4096
      %39 = vsyncadd [#allocation7], %s38
      %s40 = sshll.u32 [#allocation8], 4
      %s41 = int_to_ptr.vmem [resolvable:$true] %s40
      %46 = dma.hbm_to_vmem [thread:$0]  %s2, 4096, %s41, [#allocation7], 128, 128, 8
    $region13: #{tpu_custom_call.1} parent=1 // pred_fallthru
      _
    // Predicated region
    $region14: #{tpu_custom_call.1} parent=1 // pred_check
      _
    $region15: #{tpu_custom_call.1} parent=1 // pred_check_branch
      %48 = sbr.rel (0) target = $region17
    $region16: #{tpu_custom_call.1} parent=1 // pred_region
      %49 = dma.done [#allocation4], 4096
    $region17: #{tpu_custom_call.1} parent=1 // pred_fallthru
      _
    // Predicated region
    $region18: #{tpu_custom_call.1} parent=1 // pred_check
      _
    $region19: #{tpu_custom_call.1} parent=1 // pred_check_branch
      %51 = sbr.rel (0) target = $region21
    $region20: #{tpu_custom_call.1} parent=1 // pred_region
      %52 = dma.done [#allocation7], 2048
    $region21: #{tpu_custom_call.1} parent=1 // pred_fallthru
      _
    // Predicated region
    $region22: #{tpu_custom_call.1} parent=1 // pred_check
      _
    $region23: #{tpu_custom_call.1} parent=1 // pred_check_branch
      %54 = sbr.rel (0) target = $region25
    $region24: #{tpu_custom_call.1} parent=1 // pred_region
      %55 = dma.done [#allocation7], 4096
    $region25: #{tpu_custom_call.1} parent=1 // pred_fallthru
      _
    %p57 = scmp.eq.s32.totalorder 0, 0
    // Predicated region
    $region26: #{tpu_custom_call.1} parent=1 // pred_check
      %p58 = pneg %p57
    $region27: #{tpu_custom_call.1} parent=1 // pred_check_branch
      %60 = sbr.rel (%p58) target = $region29
    $region28: #{tpu_custom_call.1} parent=1 // pred_region
      %v61 = vld [vmem:[#allocation3] sm:$0xff]
      %v62 = vld [vmem:[#allocation3 + $0x8] sm:$0xff]
      %v63 = vld [vmem:[#allocation3 + $0x10] sm:$0xff]
      %v64 = vld [vmem:[#allocation3 + $0x18] sm:$0xff]
      %v65 = vld [vmem:[#allocation3 + $0x20] sm:$0xff]
      %v66 = vld [vmem:[#allocation3 + $0x28] sm:$0xff]
      %v67 = vld [vmem:[#allocation3 + $0x30] sm:$0xff]
      %v68 = vld [vmem:[#allocation3 + $0x38] sm:$0xff]
      %v69 = vld [vmem:[#allocation3 + $0x40] sm:$0xff]
      %v70 = vld [vmem:[#allocation3 + $0x48] sm:$0xff]
      %v71 = vld [vmem:[#allocation3 + $0x50] sm:$0xff]
      %v72 = vld [vmem:[#allocation3 + $0x58] sm:$0xff]
      %v73 = vld [vmem:[#allocation3 + $0x60] sm:$0xff]
      %v74 = vld [vmem:[#allocation3 + $0x68] sm:$0xff]
      %v75 = vld [vmem:[#allocation3 + $0x70] sm:$0xff]
      %v76 = vld [vmem:[#allocation3 + $0x78] sm:$0xff]
      %v77 = vld [vmem:[#allocation3 + $0x80] sm:$0xff]
      %v78 = vld [vmem:[#allocation3 + $0x88] sm:$0xff]
      %v79 = vld [vmem:[#allocation3 + $0x90] sm:$0xff]
      %v80 = vld [vmem:[#allocation3 + $0x98] sm:$0xff]
      %v81 = vld [vmem:[#allocation3 + $0xa0] sm:$0xff]
      %v82 = vld [vmem:[#allocation3 + $0xa8] sm:$0xff]
      %v83 = vld [vmem:[#allocation3 + $0xb0] sm:$0xff]
      %v84 = vld [vmem:[#allocation3 + $0xb8] sm:$0xff]
      %v85 = vld [vmem:[#allocation3 + $0xc0] sm:$0xff]
      %v86 = vld [vmem:[#allocation3 + $0xc8] sm:$0xff]
      %v87 = vld [vmem:[#allocation3 + $0xd0] sm:$0xff]
      %v88 = vld [vmem:[#allocation3 + $0xd8] sm:$0xff]
      %v89 = vld [vmem:[#allocation3 + $0xe0] sm:$0xff]
      %v90 = vld [vmem:[#allocation3 + $0xe8] sm:$0xff]
      %v91 = vld [vmem:[#allocation3 + $0xf0] sm:$0xff]
      %v92 = vld [vmem:[#allocation3 + $0xf8] sm:$0xff]
      %v93 = vld [vmem:[#allocation6] sm:$0xff]
      %v94 = vld [vmem:[#allocation6 + $0x8] sm:$0xff]
      %v95 = vld [vmem:[#allocation6 + $0x10] sm:$0xff]
      %v96 = vld [vmem:[#allocation6 + $0x18] sm:$0xff]
      %v97 = vld [vmem:[#allocation6 + $0x20] sm:$0xff]
      %v98 = vld [vmem:[#allocation6 + $0x28] sm:$0xff]
      %v99 = vld [vmem:[#allocation6 + $0x30] sm:$0xff]
      %v100 = vld [vmem:[#allocation6 + $0x38] sm:$0xff]
      %v101 = vld [vmem:[#allocation6 + $0x40] sm:$0xff]
      %v102 = vld [vmem:[#allocation6 + $0x48] sm:$0xff]
      %v103 = vld [vmem:[#allocation6 + $0x50] sm:$0xff]
      %v104 = vld [vmem:[#allocation6 + $0x58] sm:$0xff]
      %v105 = vld [vmem:[#allocation6 + $0x60] sm:$0xff]
      %v106 = vld [vmem:[#allocation6 + $0x68] sm:$0xff]
      %v107 = vld [vmem:[#allocation6 + $0x70] sm:$0xff]
      %v108 = vld [vmem:[#allocation6 + $0x78] sm:$0xff]
      %109 = vmatprep.subr.mxu0 0.0
      %110 = vmatpush1.msra.mxu0 %v93
      %111 = vmatprep.subr.mxu0 0.0
      %112 = vmatpush1.msra.mxu0 %v94
      %113 = vmatprep.subr.mxu0 0.0
      %114 = vmatpush1.msra.mxu0 %v95
      %115 = vmatprep.subr.mxu0 0.0
      %116 = vmatpush1.msra.mxu0 %v96
      %117 = vmatprep.subr.mxu0 0.0
      %118 = vmatpush1.msra.mxu0 %v97
      %119 = vmatprep.subr.mxu0 0.0
      %120 = vmatpush1.msra.mxu0 %v98
      %121 = vmatprep.subr.mxu0 0.0
      %122 = vmatpush1.msra.mxu0 %v99
      %123 = vmatprep.subr.mxu0 0.0
      %124 = vmatpush1.msra.mxu0 %v100
      %125 = vmatprep.subr.mxu0 0.0
      %126 = vmatpush1.msra.mxu0 %v101
      %127 = vmatprep.subr.mxu0 0.0
      %128 = vmatpush1.msra.mxu0 %v102
      %129 = vmatprep.subr.mxu0 0.0
      %130 = vmatpush1.msra.mxu0 %v103
      %131 = vmatprep.subr.mxu0 0.0
      %132 = vmatpush1.msra.mxu0 %v104
      %133 = vmatprep.subr.mxu0 0.0
      %134 = vmatpush1.msra.mxu0 %v105
      %135 = vmatprep.subr.mxu0 0.0
      %136 = vmatpush1.msra.mxu0 %v106
      %137 = vmatprep.subr.mxu0 0.0
      %138 = vmatpush1.msra.mxu0 %v107
      %139 = vmatprep.subr.mxu0 0.0
      %140 = vmatpush1.msra.mxu0 %v108
      %141 = vmatprep.subr.mxu0 0.0
      %142 = vmatpush1.msra.mxu0 0.0
      %143 = vmatprep.subr.mxu0 0.0
      %144 = vmatpush1.msra.mxu0 0.0
      %145 = vmatprep.subr.mxu0 0.0
      %146 = vmatpush1.msra.mxu0 0.0
      %147 = vmatprep.subr.mxu0 0.0
      %148 = vmatpush1.msra.mxu0 0.0
      %149 = vmatprep.subr.mxu0 0.0
      %150 = vmatpush1.msra.mxu0 0.0
      %151 = vmatprep.subr.mxu0 0.0
      %152 = vmatpush1.msra.mxu0 0.0
      %153 = vmatprep.subr.mxu0 0.0
      %154 = vmatpush1.msra.mxu0 0.0
      %155 = vmatprep.subr.mxu0 0.0
      %156 = vmatpush1.msra.mxu0 0.0
      %157 = vmatprep.subr.mxu0 0.0
      %158 = vmatpush1.msra.mxu0 0.0
      %159 = vmatprep.subr.mxu0 0.0
      %160 = vmatpush1.msra.mxu0 0.0
      %161 = vmatprep.subr.mxu0 0.0
      %162 = vmatpush1.msra.mxu0 0.0
      %163 = vmatprep.subr.mxu0 0.0
      %164 = vmatpush1.msra.mxu0 0.0
      %165 = vmatprep.subr.mxu0 0.0
      %166 = vmatpush1.msra.mxu0 0.0
      %167 = vmatprep.subr.mxu0 0.0
      %168 = vmatpush1.msra.mxu0 0.0
      %169 = vmatprep.subr.mxu0 0.0
      %170 = vmatpush1.msra.mxu0 0.0
      %171 = vmatprep.subr.mxu0 0.0
      %172 = vmatpush1.msra.mxu0 0.0
      %173 = vmatprep.mubr.f32.mxu0 0.0
      %174 = vmatmul.mubr.f32.gmra.mrb[0].mxu0 %v61
      %v175 = vpop.f32.mrb[0].mxu0
      %v176 = vadd.f32 0.0, %v175
      %v177 = vpop.f32.mrb[0].mxu0
      %178 = vmatprep.mubr.f32.mxu0 0.0
      %179 = vmatmul.mubr.f32.gmra.mrb[0].mxu0 %v62
      %v180 = vpop.f32.mrb[0].mxu0
      %v181 = vadd.f32 0.0, %v180
      %v182 = vpop.f32.mrb[0].mxu0
      %183 = vmatprep.mubr.f32.mxu0 0.0
      %184 = vmatmul.mubr.f32.gmra.mrb[0].mxu0 %v63
      %v185 = vpop.f32.mrb[0].mxu0
      %v186 = vadd.f32 0.0, %v185
      %v187 = vpop.f32.mrb[0].mxu0
      %188 = vmatprep.mubr.f32.mxu0 0.0
      %189 = vmatmul.mubr.f32.gmra.mrb[0].mxu0 %v64
      %v190 = vpop.f32.mrb[0].mxu0
      %v191 = vadd.f32 0.0, %v190
      %v192 = vpop.f32.mrb[0].mxu0
      %193 = vmatprep.mubr.f32.mxu0 0.0
      %194 = vmatmul.mubr.f32.gmra.mrb[0].mxu0 %v65
      %v195 = vpop.f32.mrb[0].mxu0
      %v196 = vadd.f32 0.0, %v195
      %v197 = vpop.f32.mrb[0].mxu0
      %198 = vmatprep.mubr.f32.mxu0 0.0
      %199 = vmatmul.mubr.f32.gmra.mrb[0].mxu0 %v66
      %v200 = vpop.f32.mrb[0].mxu0
      %v201 = vadd.f32 0.0, %v200
      %v202 = vpop.f32.mrb[0].mxu0
      %203 = vmatprep.mubr.f32.mxu0 0.0
      %204 = vmatmul.mubr.f32.gmra.mrb[0].mxu0 %v67
      %v205 = vpop.f32.mrb[0].mxu0
      %v206 = vadd.f32 0.0, %v205
      %v207 = vpop.f32.mrb[0].mxu0
      %208 = vmatprep.mubr.f32.mxu0 0.0
      %209 = vmatmul.mubr.f32.gmra.mrb[0].mxu0 %v68
      %v210 = vpop.f32.mrb[0].mxu0
      %v211 = vadd.f32 0.0, %v210
      %v212 = vpop.f32.mrb[0].mxu0
      %213 = vmatprep.mubr.f32.mxu0 0.0
      %214 = vmatmul.mubr.f32.gmra.mrb[0].mxu0 %v69
      %v215 = vpop.f32.mrb[0].mxu0
      %v216 = vadd.f32 0.0, %v215
      %v217 = vpop.f32.mrb[0].mxu0
      %218 = vmatprep.mubr.f32.mxu0 0.0
      %219 = vmatmul.mubr.f32.gmra.mrb[0].mxu0 %v70
      %v220 = vpop.f32.mrb[0].mxu0
      %v221 = vadd.f32 0.0, %v220
      %v222 = vpop.f32.mrb[0].mxu0
      %223 = vmatprep.mubr.f32.mxu0 0.0
      %224 = vmatmul.mubr.f32.gmra.mrb[0].mxu0 %v71
      %v225 = vpop.f32.mrb[0].mxu0
      %v226 = vadd.f32 0.0, %v225
      %v227 = vpop.f32.mrb[0].mxu0
      %228 = vmatprep.mubr.f32.mxu0 0.0
      %229 = vmatmul.mubr.f32.gmra.mrb[0].mxu0 %v72
      %v230 = vpop.f32.mrb[0].mxu0
      %v231 = vadd.f32 0.0, %v230
      %v232 = vpop.f32.mrb[0].mxu0
      %233 = vmatprep.mubr.f32.mxu0 0.0
      %234 = vmatmul.mubr.f32.gmra.mrb[0].mxu0 %v73
      %v235 = vpop.f32.mrb[0].mxu0
      %v236 = vadd.f32 0.0, %v235
      %v237 = vpop.f32.mrb[0].mxu0
      %238 = vmatprep.mubr.f32.mxu0 0.0
      %239 = vmatmul.mubr.f32.gmra.mrb[0].mxu0 %v74
      %v240 = vpop.f32.mrb[0].mxu0
      %v241 = vadd.f32 0.0, %v240
      %v242 = vpop.f32.mrb[0].mxu0
      %243 = vmatprep.mubr.f32.mxu0 0.0
      %244 = vmatmul.mubr.f32.gmra.mrb[0].mxu0 %v75
      %v245 = vpop.f32.mrb[0].mxu0
      %v246 = vadd.f32 0.0, %v245
      %v247 = vpop.f32.mrb[0].mxu0
      %248 = vmatprep.mubr.f32.mxu0 0.0
      %249 = vmatmul.mubr.f32.gmra.mrb[0].mxu0 %v76
      %v250 = vpop.f32.mrb[0].mxu0
      %v251 = vadd.f32 0.0, %v250
      %v252 = vpop.f32.mrb[0].mxu0
      %253 = vmatprep.mubr.f32.mxu0 0.0
      %254 = vmatmul.mubr.f32.gmra.mrb[0].mxu0 %v77
      %v255 = vpop.f32.mrb[0].mxu0
      %v256 = vadd.f32 0.0, %v255
      %v257 = vpop.f32.mrb[0].mxu0
      %258 = vmatprep.mubr.f32.mxu0 0.0
      %259 = vmatmul.mubr.f32.gmra.mrb[0].mxu0 %v78
      %v260 = vpop.f32.mrb[0].mxu0
      %v261 = vadd.f32 0.0, %v260
      %v262 = vpop.f32.mrb[0].mxu0
      %263 = vmatprep.mubr.f32.mxu0 0.0
      %264 = vmatmul.mubr.f32.gmra.mrb[0].mxu0 %v79
      %v265 = vpop.f32.mrb[0].mxu0
      %v266 = vadd.f32 0.0, %v265
      %v267 = vpop.f32.mrb[0].mxu0
      %268 = vmatprep.mubr.f32.mxu0 0.0
      %269 = vmatmul.mubr.f32.gmra.mrb[0].mxu0 %v80
      %v270 = vpop.f32.mrb[0].mxu0
      %v271 = vadd.f32 0.0, %v270
      %v272 = vpop.f32.mrb[0].mxu0
      %273 = vmatprep.mubr.f32.mxu0 0.0
      %274 = vmatmul.mubr.f32.gmra.mrb[0].mxu0 %v81
      %v275 = vpop.f32.mrb[0].mxu0
      %v276 = vadd.f32 0.0, %v275
      %v277 = vpop.f32.mrb[0].mxu0
      %278 = vmatprep.mubr.f32.mxu0 0.0
      %279 = vmatmul.mubr.f32.gmra.mrb[0].mxu0 %v82
      %v280 = vpop.f32.mrb[0].mxu0
      %v281 = vadd.f32 0.0, %v280
      %v282 = vpop.f32.mrb[0].mxu0
      %283 = vmatprep.mubr.f32.mxu0 0.0
      %284 = vmatmul.mubr.f32.gmra.mrb[0].mxu0 %v83
      %v285 = vpop.f32.mrb[0].mxu0
      %v286 = vadd.f32 0.0, %v285
      %v287 = vpop.f32.mrb[0].mxu0
      %288 = vmatprep.mubr.f32.mxu0 0.0
      %289 = vmatmul.mubr.f32.gmra.mrb[0].mxu0 %v84
      %v290 = vpop.f32.mrb[0].mxu0
      %v291 = vadd.f32 0.0, %v290
      %v292 = vpop.f32.mrb[0].mxu0
      %293 = vmatprep.mubr.f32.mxu0 0.0
      %294 = vmatmul.mubr.f32.gmra.mrb[0].mxu0 %v85
      %v295 = vpop.f32.mrb[0].mxu0
      %v296 = vadd.f32 0.0, %v295
      %v297 = vpop.f32.mrb[0].mxu0
      %298 = vmatprep.mubr.f32.mxu0 0.0
      %299 = vmatmul.mubr.f32.gmra.mrb[0].mxu0 %v86
      %v300 = vpop.f32.mrb[0].mxu0
      %v301 = vadd.f32 0.0, %v300
      %v302 = vpop.f32.mrb[0].mxu0
      %303 = vmatprep.mubr.f32.mxu0 0.0
      %304 = vmatmul.mubr.f32.gmra.mrb[0].mxu0 %v87
      %v305 = vpop.f32.mrb[0].mxu0
      %v306 = vadd.f32 0.0, %v305
      %v307 = vpop.f32.mrb[0].mxu0
      %308 = vmatprep.mubr.f32.mxu0 0.0
      %309 = vmatmul.mubr.f32.gmra.mrb[0].mxu0 %v88
      %v310 = vpop.f32.mrb[0].mxu0
      %v311 = vadd.f32 0.0, %v310
      %v312 = vpop.f32.mrb[0].mxu0
      %313 = vmatprep.mubr.f32.mxu0 0.0
      %314 = vmatmul.mubr.f32.gmra.mrb[0].mxu0 %v89
      %v315 = vpop.f32.mrb[0].mxu0
      %v316 = vadd.f32 0.0, %v315
      %v317 = vpop.f32.mrb[0].mxu0
      %318 = vmatprep.mubr.f32.mxu0 0.0
      %319 = vmatmul.mubr.f32.gmra.mrb[0].mxu0 %v90
      %v320 = vpop.f32.mrb[0].mxu0
      %v321 = vadd.f32 0.0, %v320
      %v322 = vpop.f32.mrb[0].mxu0
      %323 = vmatprep.mubr.f32.mxu0 0.0
      %324 = vmatmul.mubr.f32.gmra.mrb[0].mxu0 %v91
      %v325 = vpop.f32.mrb[0].mxu0
      %v326 = vadd.f32 0.0, %v325
      %v327 = vpop.f32.mrb[0].mxu0
      %328 = vmatprep.mubr.f32.mxu0 0.0
      %329 = vmatmul.mubr.f32.gmra.mrb[0].mxu0 %v92
      %v330 = vpop.f32.mrb[0].mxu0
      %v331 = vadd.f32 0.0, %v330
      %v332 = vpop.f32.mrb[0].mxu0
      %333 = vdwg.mxu0
      %v334 = vpack.c.bf16 %v181, %v176
      %v335 = vpack.c.bf16 %v191, %v186
      %v336 = vpack.c.bf16 %v201, %v196
      %v337 = vpack.c.bf16 %v211, %v206
      %v338 = vpack.c.bf16 %v221, %v216
      %v339 = vpack.c.bf16 %v231, %v226
      %v340 = vpack.c.bf16 %v241, %v236
      %v341 = vpack.c.bf16 %v251, %v246
      %v342 = vpack.c.bf16 %v261, %v256
      %v343 = vpack.c.bf16 %v271, %v266
      %v344 = vpack.c.bf16 %v281, %v276
      %v345 = vpack.c.bf16 %v291, %v286
      %v346 = vpack.c.bf16 %v301, %v296
      %v347 = vpack.c.bf16 %v311, %v306
      %v348 = vpack.c.bf16 %v321, %v316
      %v349 = vpack.c.bf16 %v331, %v326
      %350 = vst [vmem:[#allocation2] sm:$0xff] %v334
      %351 = vst [vmem:[#allocation2 + $0x8] sm:$0xff] %v335
      %352 = vst [vmem:[#allocation2 + $0x10] sm:$0xff] %v336
      %353 = vst [vmem:[#allocation2 + $0x18] sm:$0xff] %v337
      %354 = vst [vmem:[#allocation2 + $0x20] sm:$0xff] %v338
      %355 = vst [vmem:[#allocation2 + $0x28] sm:$0xff] %v339
      %356 = vst [vmem:[#allocation2 + $0x30] sm:$0xff] %v340
      %357 = vst [vmem:[#allocation2 + $0x38] sm:$0xff] %v341
      %358 = vst [vmem:[#allocation2 + $0x40] sm:$0xff] %v342
      %359 = vst [vmem:[#allocation2 + $0x48] sm:$0xff] %v343
      %360 = vst [vmem:[#allocation2 + $0x50] sm:$0xff] %v344
      %361 = vst [vmem:[#allocation2 + $0x58] sm:$0xff] %v345
      %362 = vst [vmem:[#allocation2 + $0x60] sm:$0xff] %v346
      %363 = vst [vmem:[#allocation2 + $0x68] sm:$0xff] %v347
      %364 = vst [vmem:[#allocation2 + $0x70] sm:$0xff] %v348
      %365 = vst [vmem:[#allocation2 + $0x78] sm:$0xff] %v349
    $region29: #{tpu_custom_call.1} parent=1 // pred_fallthru
      _
    %v366 = vld [vmem:[#allocation8] sm:$0xff]
    %v367 = vld [vmem:[#allocation8 + $0x8] sm:$0xff]
    %v368 = vld [vmem:[#allocation8 + $0x10] sm:$0xff]
    %v369 = vld [vmem:[#allocation8 + $0x18] sm:$0xff]
    %v370 = vld [vmem:[#allocation8 + $0x20] sm:$0xff]
    %v371 = vld [vmem:[#allocation8 + $0x28] sm:$0xff]
    %v372 = vld [vmem:[#allocation8 + $0x30] sm:$0xff]
    %v373 = vld [vmem:[#allocation8 + $0x38] sm:$0xff]
    %v374 = vld [vmem:[#allocation8 + $0x40] sm:$0xff]
    %v375 = vld [vmem:[#allocation8 + $0x48] sm:$0xff]
    %v376 = vld [vmem:[#allocation8 + $0x50] sm:$0xff]
    %v377 = vld [vmem:[#allocation8 + $0x58] sm:$0xff]
    %v378 = vld [vmem:[#allocation8 + $0x60] sm:$0xff]
    %v379 = vld [vmem:[#allocation8 + $0x68] sm:$0xff]
    %v380 = vld [vmem:[#allocation8 + $0x70] sm:$0xff]
    %v381 = vld [vmem:[#allocation8 + $0x78] sm:$0xff]
    %v382 = vld [vmem:[#allocation8 + $0x80] sm:$0xff]
    %v383 = vld [vmem:[#allocation8 + $0x88] sm:$0xff]
    %v384 = vld [vmem:[#allocation8 + $0x90] sm:$0xff]
    %v385 = vld [vmem:[#allocation8 + $0x98] sm:$0xff]
    %v386 = vld [vmem:[#allocation8 + $0xa0] sm:$0xff]
    %v387 = vld [vmem:[#allocation8 + $0xa8] sm:$0xff]
    %v388 = vld [vmem:[#allocation8 + $0xb0] sm:$0xff]
    %v389 = vld [vmem:[#allocation8 + $0xb8] sm:$0xff]
    %v390 = vld [vmem:[#allocation8 + $0xc0] sm:$0xff]
    %v391 = vld [vmem:[#allocation8 + $0xc8] sm:$0xff]
    %v392 = vld [vmem:[#allocation8 + $0xd0] sm:$0xff]
    %v393 = vld [vmem:[#allocation8 + $0xd8] sm:$0xff]
    %v394 = vld [vmem:[#allocation8 + $0xe0] sm:$0xff]
    %v395 = vld [vmem:[#allocation8 + $0xe8] sm:$0xff]
    %v396 = vld [vmem:[#allocation8 + $0xf0] sm:$0xff]
    %v397 = vld [vmem:[#allocation8 + $0xf8] sm:$0xff]
    %v398 = vld [vmem:[#allocation2] sm:$0xff]
    %v399 = vld [vmem:[#allocation2 + $0x8] sm:$0xff]
    %v400 = vld [vmem:[#allocation2 + $0x10] sm:$0xff]
    %v401 = vld [vmem:[#allocation2 + $0x18] sm:$0xff]
    %v402 = vld [vmem:[#allocation2 + $0x20] sm:$0xff]
    %v403 = vld [vmem:[#allocation2 + $0x28] sm:$0xff]
    %v404 = vld [vmem:[#allocation2 + $0x30] sm:$0xff]
    %v405 = vld [vmem:[#allocation2 + $0x38] sm:$0xff]
    %v406 = vld [vmem:[#allocation2 + $0x40] sm:$0xff]
    %v407 = vld [vmem:[#allocation2 + $0x48] sm:$0xff]
    %v408 = vld [vmem:[#allocation2 + $0x50] sm:$0xff]
    %v409 = vld [vmem:[#allocation2 + $0x58] sm:$0xff]
    %v410 = vld [vmem:[#allocation2 + $0x60] sm:$0xff]
    %v411 = vld [vmem:[#allocation2 + $0x68] sm:$0xff]
    %v412 = vld [vmem:[#allocation2 + $0x70] sm:$0xff]
    %v413 = vld [vmem:[#allocation2 + $0x78] sm:$0xff]
    %v446 = vunpack.c.l.b16 %v366
    %v447 = vunpack.c.h.b16 %v366
    %v448 = vunpack.c.l.b16 %v367
    %v449 = vunpack.c.h.b16 %v367
    %v450 = vunpack.c.l.b16 %v368
    %v451 = vunpack.c.h.b16 %v368
    %v452 = vunpack.c.l.b16 %v369
    %v453 = vunpack.c.h.b16 %v369
    %v454 = vunpack.c.l.b16 %v370
    %v455 = vunpack.c.h.b16 %v370
    %v456 = vunpack.c.l.b16 %v371
    %v457 = vunpack.c.h.b16 %v371
    %v458 = vunpack.c.l.b16 %v372
    %v459 = vunpack.c.h.b16 %v372
    %v460 = vunpack.c.l.b16 %v373
    %v461 = vunpack.c.h.b16 %v373
    %v462 = vunpack.c.l.b16 %v374
    %v463 = vunpack.c.h.b16 %v374
    %v464 = vunpack.c.l.b16 %v375
    %v465 = vunpack.c.h.b16 %v375
    %v466 = vunpack.c.l.b16 %v376
    %v467 = vunpack.c.h.b16 %v376
    %v468 = vunpack.c.l.b16 %v377
    %v469 = vunpack.c.h.b16 %v377
    %v470 = vunpack.c.l.b16 %v378
    %v471 = vunpack.c.h.b16 %v378
    %v472 = vunpack.c.l.b16 %v379
    %v473 = vunpack.c.h.b16 %v379
    %v474 = vunpack.c.l.b16 %v380
    %v475 = vunpack.c.h.b16 %v380
    %v476 = vunpack.c.l.b16 %v381
    %v477 = vunpack.c.h.b16 %v381
    %v478 = vunpack.c.l.b16 %v382
    %v479 = vunpack.c.h.b16 %v382
    %v480 = vunpack.c.l.b16 %v383
    %v481 = vunpack.c.h.b16 %v383
    %v482 = vunpack.c.l.b16 %v384
    %v483 = vunpack.c.h.b16 %v384
    %v484 = vunpack.c.l.b16 %v385
    %v485 = vunpack.c.h.b16 %v385
    %v486 = vunpack.c.l.b16 %v386
    %v487 = vunpack.c.h.b16 %v386
    %v488 = vunpack.c.l.b16 %v387
    %v489 = vunpack.c.h.b16 %v387
    %v490 = vunpack.c.l.b16 %v388
    %v491 = vunpack.c.h.b16 %v388
    %v492 = vunpack.c.l.b16 %v389
    %v493 = vunpack.c.h.b16 %v389
    %v494 = vunpack.c.l.b16 %v390
    %v495 = vunpack.c.h.b16 %v390
    %v496 = vunpack.c.l.b16 %v391
    %v497 = vunpack.c.h.b16 %v391
    %v498 = vunpack.c.l.b16 %v392
    %v499 = vunpack.c.h.b16 %v392
    %v500 = vunpack.c.l.b16 %v393
    %v501 = vunpack.c.h.b16 %v393
    %v502 = vunpack.c.l.b16 %v394
    %v503 = vunpack.c.h.b16 %v394
    %v504 = vunpack.c.l.b16 %v395
    %v505 = vunpack.c.h.b16 %v395
    %v506 = vunpack.c.l.b16 %v396
    %v507 = vunpack.c.h.b16 %v396
    %v508 = vunpack.c.l.b16 %v397
    %v509 = vunpack.c.h.b16 %v397
    %v510 = vpack.c.b16 %v448, %v446
    %v511 = vpack.c.b16 %v449, %v447
    %v512 = vpack.c.b16 %v452, %v450
    %v513 = vpack.c.b16 %v453, %v451
    %v514 = vpack.c.b16 %v456, %v454
    %v515 = vpack.c.b16 %v457, %v455
    %v516 = vpack.c.b16 %v460, %v458
    %v517 = vpack.c.b16 %v461, %v459
    %v518 = vpack.c.b16 %v464, %v462
    %v519 = vpack.c.b16 %v465, %v463
    %v520 = vpack.c.b16 %v468, %v466
    %v521 = vpack.c.b16 %v469, %v467
    %v522 = vpack.c.b16 %v472, %v470
    %v523 = vpack.c.b16 %v473, %v471
    %v524 = vpack.c.b16 %v476, %v474
    %v525 = vpack.c.b16 %v477, %v475
    %v526 = vpack.c.b16 %v480, %v478
    %v527 = vpack.c.b16 %v481, %v479
    %v528 = vpack.c.b16 %v484, %v482
    %v529 = vpack.c.b16 %v485, %v483
    %v530 = vpack.c.b16 %v488, %v486
    %v531 = vpack.c.b16 %v489, %v487
    %v532 = vpack.c.b16 %v492, %v490
    %v533 = vpack.c.b16 %v493, %v491
    %v534 = vpack.c.b16 %v496, %v494
    %v535 = vpack.c.b16 %v497, %v495
    %v536 = vpack.c.b16 %v500, %v498
    %v537 = vpack.c.b16 %v501, %v499
    %v538 = vpack.c.b16 %v504, %v502
    %v539 = vpack.c.b16 %v505, %v503
    %v540 = vpack.c.b16 %v508, %v506
    %v541 = vpack.c.b16 %v509, %v507
    %574 = vmatprep.subr.bf16.mxu0 0
    %575 = vmatpush1.bf16.msra.mxu0 %v398
    %576 = vmatprep.subr.bf16.mxu0 0
    %577 = vmatpush1.bf16.msra.mxu0 %v399
    %578 = vmatprep.subr.bf16.mxu0 0
    %579 = vmatpush1.bf16.msra.mxu0 %v400
    %580 = vmatprep.subr.bf16.mxu0 0
    %581 = vmatpush1.bf16.msra.mxu0 %v401
    %582 = vmatprep.subr.bf16.mxu0 0
    %583 = vmatpush1.bf16.msra.mxu0 %v402
    %584 = vmatprep.subr.bf16.mxu0 0
    %585 = vmatpush1.bf16.msra.mxu0 %v403
    %586 = vmatprep.subr.bf16.mxu0 0
    %587 = vmatpush1.bf16.msra.mxu0 %v404
    %588 = vmatprep.subr.bf16.mxu0 0
    %589 = vmatpush1.bf16.msra.mxu0 %v405
    %590 = vmatprep.subr.bf16.mxu0 0
    %591 = vmatpush1.bf16.msra.mxu0 %v406
    %592 = vmatprep.subr.bf16.mxu0 0
    %593 = vmatpush1.bf16.msra.mxu0 %v407
    %594 = vmatprep.subr.bf16.mxu0 0
    %595 = vmatpush1.bf16.msra.mxu0 %v408
    %596 = vmatprep.subr.bf16.mxu0 0
    %597 = vmatpush1.bf16.msra.mxu0 %v409
    %598 = vmatprep.subr.bf16.mxu0 0
    %599 = vmatpush1.bf16.msra.mxu0 %v410
    %600 = vmatprep.subr.bf16.mxu0 0
    %601 = vmatpush1.bf16.msra.mxu0 %v411
    %602 = vmatprep.subr.bf16.mxu0 0
    %603 = vmatpush1.bf16.msra.mxu0 %v412
    %604 = vmatprep.subr.bf16.mxu0 0
    %605 = vmatpush1.bf16.msra.mxu0 %v413
    %606 = vmatprep.mubr.bf16.mxu0 %v511
    %607 = vmatmul.mubr.bf16.gmra.mrb[0].mxu0 %v510
    %v608 = vpop.f32.mrb[0].mxu0
    %v609 = vadd.f32 0.0, %v608
    %v610 = vpop.f32.mrb[0].mxu0
    %v611 = vpop.f32.mrb[0].mxu0
    %v612 = vadd.f32 0.0, %v611
    %v613 = vpop.f32.mrb[0].mxu0
    %614 = vmatprep.mubr.bf16.mxu0 %v513
    %615 = vmatmul.mubr.bf16.gmra.mrb[0].mxu0 %v512
    %v616 = vpop.f32.mrb[0].mxu0
    %v617 = vadd.f32 0.0, %v616
    %v618 = vpop.f32.mrb[0].mxu0
    %v619 = vpop.f32.mrb[0].mxu0
    %v620 = vadd.f32 0.0, %v619
    %v621 = vpop.f32.mrb[0].mxu0
    %622 = vmatprep.mubr.bf16.mxu0 %v515
    %623 = vmatmul.mubr.bf16.gmra.mrb[0].mxu0 %v514
    %v624 = vpop.f32.mrb[0].mxu0
    %v625 = vadd.f32 0.0, %v624
    %v626 = vpop.f32.mrb[0].mxu0
    %v627 = vpop.f32.mrb[0].mxu0
    %v628 = vadd.f32 0.0, %v627
    %v629 = vpop.f32.mrb[0].mxu0
    %630 = vmatprep.mubr.bf16.mxu0 %v517
    %631 = vmatmul.mubr.bf16.gmra.mrb[0].mxu0 %v516
    %v632 = vpop.f32.mrb[0].mxu0
    %v633 = vadd.f32 0.0, %v632
    %v634 = vpop.f32.mrb[0].mxu0
    %v635 = vpop.f32.mrb[0].mxu0
    %v636 = vadd.f32 0.0, %v635
    %v637 = vpop.f32.mrb[0].mxu0
    %638 = vmatprep.mubr.bf16.mxu0 %v519
    %639 = vmatmul.mubr.bf16.gmra.mrb[0].mxu0 %v518
    %v640 = vpop.f32.mrb[0].mxu0
    %v641 = vadd.f32 0.0, %v640
    %v642 = vpop.f32.mrb[0].mxu0
    %v643 = vpop.f32.mrb[0].mxu0
    %v644 = vadd.f32 0.0, %v643
    %v645 = vpop.f32.mrb[0].mxu0
    %646 = vmatprep.mubr.bf16.mxu0 %v521
    %647 = vmatmul.mubr.bf16.gmra.mrb[0].mxu0 %v520
    %v648 = vpop.f32.mrb[0].mxu0
    %v649 = vadd.f32 0.0, %v648
    %v650 = vpop.f32.mrb[0].mxu0
    %v651 = vpop.f32.mrb[0].mxu0
    %v652 = vadd.f32 0.0, %v651
    %v653 = vpop.f32.mrb[0].mxu0
    %654 = vmatprep.mubr.bf16.mxu0 %v523
    %655 = vmatmul.mubr.bf16.gmra.mrb[0].mxu0 %v522
    %v656 = vpop.f32.mrb[0].mxu0
    %v657 = vadd.f32 0.0, %v656
    %v658 = vpop.f32.mrb[0].mxu0
    %v659 = vpop.f32.mrb[0].mxu0
    %v660 = vadd.f32 0.0, %v659
    %v661 = vpop.f32.mrb[0].mxu0
    %662 = vmatprep.mubr.bf16.mxu0 %v525
    %663 = vmatmul.mubr.bf16.gmra.mrb[0].mxu0 %v524
    %v664 = vpop.f32.mrb[0].mxu0
    %v665 = vadd.f32 0.0, %v664
    %v666 = vpop.f32.mrb[0].mxu0
    %v667 = vpop.f32.mrb[0].mxu0
    %v668 = vadd.f32 0.0, %v667
    %v669 = vpop.f32.mrb[0].mxu0
    %670 = vmatprep.mubr.bf16.mxu0 %v527
    %671 = vmatmul.mubr.bf16.gmra.mrb[0].mxu0 %v526
    %v672 = vpop.f32.mrb[0].mxu0
    %v673 = vadd.f32 0.0, %v672
    %v674 = vpop.f32.mrb[0].mxu0
    %v675 = vpop.f32.mrb[0].mxu0
    %v676 = vadd.f32 0.0, %v675
    %v677 = vpop.f32.mrb[0].mxu0
    %678 = vmatprep.mubr.bf16.mxu0 %v529
    %679 = vmatmul.mubr.bf16.gmra.mrb[0].mxu0 %v528
    %v680 = vpop.f32.mrb[0].mxu0
    %v681 = vadd.f32 0.0, %v680
    %v682 = vpop.f32.mrb[0].mxu0
    %v683 = vpop.f32.mrb[0].mxu0
    %v684 = vadd.f32 0.0, %v683
    %v685 = vpop.f32.mrb[0].mxu0
    %686 = vmatprep.mubr.bf16.mxu0 %v531
    %687 = vmatmul.mubr.bf16.gmra.mrb[0].mxu0 %v530
    %v688 = vpop.f32.mrb[0].mxu0
    %v689 = vadd.f32 0.0, %v688
    %v690 = vpop.f32.mrb[0].mxu0
    %v691 = vpop.f32.mrb[0].mxu0
    %v692 = vadd.f32 0.0, %v691
    %v693 = vpop.f32.mrb[0].mxu0
    %694 = vmatprep.mubr.bf16.mxu0 %v533
    %695 = vmatmul.mubr.bf16.gmra.mrb[0].mxu0 %v532
    %v696 = vpop.f32.mrb[0].mxu0
    %v697 = vadd.f32 0.0, %v696
    %v698 = vpop.f32.mrb[0].mxu0
    %v699 = vpop.f32.mrb[0].mxu0
    %v700 = vadd.f32 0.0, %v699
    %v701 = vpop.f32.mrb[0].mxu0
    %702 = vmatprep.mubr.bf16.mxu0 %v535
    %703 = vmatmul.mubr.bf16.gmra.mrb[0].mxu0 %v534
    %v704 = vpop.f32.mrb[0].mxu0
    %v705 = vadd.f32 0.0, %v704
    %v706 = vpop.f32.mrb[0].mxu0
    %v707 = vpop.f32.mrb[0].mxu0
    %v708 = vadd.f32 0.0, %v707
    %v709 = vpop.f32.mrb[0].mxu0
    %710 = vmatprep.mubr.bf16.mxu0 %v537
    %711 = vmatmul.mubr.bf16.gmra.mrb[0].mxu0 %v536
    %v712 = vpop.f32.mrb[0].mxu0
    %v713 = vadd.f32 0.0, %v712
    %v714 = vpop.f32.mrb[0].mxu0
    %v715 = vpop.f32.mrb[0].mxu0
    %v716 = vadd.f32 0.0, %v715
    %v717 = vpop.f32.mrb[0].mxu0
    %718 = vmatprep.mubr.bf16.mxu0 %v539
    %719 = vmatmul.mubr.bf16.gmra.mrb[0].mxu0 %v538
    %v720 = vpop.f32.mrb[0].mxu0
    %v721 = vadd.f32 0.0, %v720
    %v722 = vpop.f32.mrb[0].mxu0
    %v723 = vpop.f32.mrb[0].mxu0
    %v724 = vadd.f32 0.0, %v723
    %v725 = vpop.f32.mrb[0].mxu0
    %726 = vmatprep.mubr.bf16.mxu0 %v541
    %727 = vmatmul.mubr.bf16.gmra.mrb[0].mxu0 %v540
    %v728 = vpop.f32.mrb[0].mxu0
    %v729 = vadd.f32 0.0, %v728
    %v730 = vpop.f32.mrb[0].mxu0
    %v731 = vpop.f32.mrb[0].mxu0
    %v732 = vadd.f32 0.0, %v731
    %v733 = vpop.f32.mrb[0].mxu0
    %734 = vdwg.mxu0
    %735 = vst [vmem:[#allocation9] sm:$0xff] %v609
    %736 = vst [vmem:[#allocation9 + $0x8] sm:$0xff] %v612
    %737 = vst [vmem:[#allocation9 + $0x10] sm:$0xff] %v617
    %738 = vst [vmem:[#allocation9 + $0x18] sm:$0xff] %v620
    %739 = vst [vmem:[#allocation9 + $0x20] sm:$0xff] %v625
    %740 = vst [vmem:[#allocation9 + $0x28] sm:$0xff] %v628
    %741 = vst [vmem:[#allocation9 + $0x30] sm:$0xff] %v633
    %742 = vst [vmem:[#allocation9 + $0x38] sm:$0xff] %v636
    %743 = vst [vmem:[#allocation9 + $0x40] sm:$0xff] %v641
    %744 = vst [vmem:[#allocation9 + $0x48] sm:$0xff] %v644
    %745 = vst [vmem:[#allocation9 + $0x50] sm:$0xff] %v649
    %746 = vst [vmem:[#allocation9 + $0x58] sm:$0xff] %v652
    %747 = vst [vmem:[#allocation9 + $0x60] sm:$0xff] %v657
    %748 = vst [vmem:[#allocation9 + $0x68] sm:$0xff] %v660
    %749 = vst [vmem:[#allocation9 + $0x70] sm:$0xff] %v665
    %750 = vst [vmem:[#allocation9 + $0x78] sm:$0xff] %v668
    %751 = vst [vmem:[#allocation9 + $0x80] sm:$0xff] %v673
    %752 = vst [vmem:[#allocation9 + $0x88] sm:$0xff] %v676
    %753 = vst [vmem:[#allocation9 + $0x90] sm:$0xff] %v681
    %754 = vst [vmem:[#allocation9 + $0x98] sm:$0xff] %v684
    %755 = vst [vmem:[#allocation9 + $0xa0] sm:$0xff] %v689
    %756 = vst [vmem:[#allocation9 + $0xa8] sm:$0xff] %v692
    %757 = vst [vmem:[#allocation9 + $0xb0] sm:$0xff] %v697
    %758 = vst [vmem:[#allocation9 + $0xb8] sm:$0xff] %v700
    %759 = vst [vmem:[#allocation9 + $0xc0] sm:$0xff] %v705
    %760 = vst [vmem:[#allocation9 + $0xc8] sm:$0xff] %v708
    %761 = vst [vmem:[#allocation9 + $0xd0] sm:$0xff] %v713
    %762 = vst [vmem:[#allocation9 + $0xd8] sm:$0xff] %v716
    %763 = vst [vmem:[#allocation9 + $0xe0] sm:$0xff] %v721
    %764 = vst [vmem:[#allocation9 + $0xe8] sm:$0xff] %v724
    %765 = vst [vmem:[#allocation9 + $0xf0] sm:$0xff] %v729
    %766 = vst [vmem:[#allocation9 + $0xf8] sm:$0xff] %v732
    // Predicated region
    $region30: #{tpu_custom_call.1} parent=1 // pred_check
      _
    $region31: #{tpu_custom_call.1} parent=1 // pred_check_branch
      %768 = sbr.rel (0) target = $region33
    $region32: #{tpu_custom_call.1} parent=1 // pred_region
      %s770 = ssub.s32 4096, 4096
      %771 = vsyncadd [#allocation5], %s770
      %s772 = sshll.u32 [#allocation9], 4
      %s773 = int_to_ptr.vmem [resolvable:$true] %s772
      %778 = dma.vmem_to_hbm [thread:$0]  %s773, 4096, %s3, [#allocation5], 128, 128, 8
    $region33: #{tpu_custom_call.1} parent=1 // pred_fallthru
      _
    // Predicated region
    $region34: #{tpu_custom_call.1} parent=1 // pred_check
      _
    $region35: #{tpu_custom_call.1} parent=1 // pred_check_branch
      %780 = sbr.rel (0) target = $region37
    $region36: #{tpu_custom_call.1} parent=1 // pred_region
      %781 = dma.done [#allocation5], 4096
    $region37: #{tpu_custom_call.1} parent=1 // pred_fallthru
      _
    %782 = vsyncpa [#allocation4], 1
    %783 = vsyncpa [#allocation7], 1
    %784 = vsyncpa [#allocation5], 1

</llo_original>
